<compile_context>
chip_gen: v5e
topology: v5e:2x2
jax: 0.10.0
libtpu: 0.0.40
codegen_flags: <defaults>
</compile_context>

<pallas_src>
import functools

import jax
import jax.numpy as jnp
from jax import lax
from jax.experimental import pallas as pl
from jax.experimental.pallas import tpu as pltpu


def _round_up(x, m):
    return ((x + m - 1) // m) * m


def _self_output_kernel(x_ref, res_ref, wt_ref, b_ref, g_ref, beta_ref, o_ref,
                        *, eps):
    # x_ref:    (tm, H)   tile of hidden_states
    # res_ref:  (tm, H)   tile of input_tensor (residual)
    # wt_ref:   (H, H)    dense weight, transposed to (in, out), activation dtype
    # b_ref:    (1, H)    dense bias
    # g_ref:    (1, H)    LayerNorm gamma
    # beta_ref: (1, H)    LayerNorm beta

    # Dense in the activation dtype (bf16 stays on the fast MXU path),
    # f32 accumulation on the MXU result path.
    acc = jnp.dot(x_ref[...], wt_ref[...], preferred_element_type=jnp.float32)

    # TODO(synk): dropout skipped (inference-mode identity); add a pltpu PRNG
    # mask here if training-mode parity is ever needed.

    # Bias + residual folded into one f32 epilogue chain.
    h = acc + (res_ref[...].astype(jnp.float32) + b_ref[...].astype(jnp.float32))

    # LayerNorm over the lane (last) axis — lane reductions go to the XLU,
    # rsqrt to the EUP; biased variance matches torch.nn.LayerNorm.
    mean = jnp.mean(h, axis=-1, keepdims=True)
    centered = h - mean
    var = jnp.mean(centered * centered, axis=-1, keepdims=True)
    normed = centered * lax.rsqrt(var + eps)
    out = normed * g_ref[...].astype(jnp.float32) + beta_ref[...].astype(jnp.float32)

    o_ref[...] = out.astype(o_ref.dtype)


def bert_self_output(hidden_states, input_tensor, weight, bias, gamma, beta,
                     *, eps=1e-12, tile_m=512, min_grid_steps=8,
                     vmem_limit_bytes=None):
    """hidden_states, input_tensor: [B, S, H]; weight: [H_out, H_in] (torch layout).

    tile_m: token rows per grid step (128-aligned recommended).  Defaults to
    512 which is near the measured HBM-roofline sweet spot on v6e; v7x is
    covered by the min_grid_steps clamp and the 64 MiB VMEM cap; on v5e pass
    tile_m=256 (or raise vmem_limit_bytes) for f32/H=1024.
    Wrap this function in jax.jit so the one-time weight transpose/cast is
    cached instead of re-materialized in HBM every call.
    """
    B, S, H = hidden_states.shape
    M = B * S
    act_dtype = hidden_states.dtype
    dsize = jnp.dtype(act_dtype).itemsize
    sub = 8 if dsize >= 4 else 16      # sublane granularity (bf16 packs 2 rows)

    # ---- tile_m selection (no token-axis padding; partial blocks are fine) --
    tile_m = _round_up(max(int(tile_m), sub), sub)
    if min_grid_steps and M >= min_grid_steps * 128:
        # Keep >= min_grid_steps steps so both v7x TensorCores get work and
        # the DMA pipeline stays deep.
        tile_m = min(tile_m, max(128, _round_up(pl.cdiv(M, min_grid_steps), 128)))
    tile_m = min(tile_m, _round_up(M, sub))
    grid = (pl.cdiv(M, tile_m),)

    x2 = hidden_states.reshape(M, H)
    r2 = input_tensor.reshape(M, H)

    # One-time layout/dtype prep: (out, in) -> (in, out), activation dtype.
    wt = weight.T.astype(act_dtype)
    b2 = bias.reshape(1, H).astype(act_dtype)
    g2 = gamma.reshape(1, H).astype(act_dtype)
    be2 = beta.reshape(1, H).astype(act_dtype)

    if vmem_limit_bytes is None:
        # streamed x / res / out (double-buffered) + resident params
        # + f32 epilogue headroom; capped at v7x's 64 MiB physical VMEM.
        need = (3 * 2 * tile_m * H + H * H + 3 * H) * dsize + 6 * tile_m * H * 4
        vmem_limit_bytes = int(min(64 << 20, max(32 << 20, need)))

    cost = pl.CostEstimate(
        flops=2 * M * H * H + 10 * M * H,
        transcendentals=M,
        bytes_accessed=(3 * M * H + H * H + 3 * H) * dsize)

    kernel = functools.partial(_self_output_kernel, eps=eps)

    out2 = pl.pallas_call(
        kernel,
        out_shape=jax.ShapeDtypeStruct((M, H), act_dtype),
        grid_spec=pltpu.PrefetchScalarGridSpec(
            num_scalar_prefetch=0,
            grid=grid,
            in_specs=[
                # streaming tiles (default double-buffered)
                pl.BlockSpec((tile_m, H), lambda i: (i, 0)),   # hidden_states
                pl.BlockSpec((tile_m, H), lambda i: (i, 0)),   # residual
                # resident operands: constant index_map -> single buffer
                pl.BlockSpec((H, H), lambda i: (0, 0),
                             pipeline_mode=pl.Buffered(1)),    # W^T
                pl.BlockSpec((1, H), lambda i: (0, 0),
                             pipeline_mode=pl.Buffered(1)),    # bias
                pl.BlockSpec((1, H), lambda i: (0, 0),
                             pipeline_mode=pl.Buffered(1)),    # gamma
                pl.BlockSpec((1, H), lambda i: (0, 0),
                             pipeline_mode=pl.Buffered(1)),    # beta
            ],
            out_specs=pl.BlockSpec((tile_m, H), lambda i: (i, 0)),
        ),
        compiler_params=pltpu.CompilerParams(
            dimension_semantics=("parallel",),
            vmem_limit_bytes=vmem_limit_bytes),
        cost_estimate=cost,
    )(x2, r2, wt, b2, g2, be2)

    return out2.reshape(B, S, H)


def _reference(hidden_states, input_tensor, weight, bias, gamma, beta, eps=1e-12):
    y = jnp.einsum("bsh,oh->bso", hidden_states, weight) + bias
    h = y + input_tensor
    mean = jnp.mean(h, axis=-1, keepdims=True)
    var = jnp.mean((h - mean) ** 2, axis=-1, keepdims=True)
    return (h - mean) / jnp.sqrt(var + eps) * gamma + beta


if __name__ == "__main__":
    eps = 1e-12
    key = jax.random.PRNGKey(0)
    k1, k2, k3, k4 = jax.random.split(key, 4)

    # Jitted wrapper: caches the weight transpose/cast per (shape, dtype).
    fn = jax.jit(bert_self_output,
                 static_argnames=("eps", "tile_m", "min_grid_steps",
                                  "vmem_limit_bytes"))

    # --- Check 1: small shapes (B=2, S=8, H=32), f32 ------------------------
    B, S, H = 2, 8, 32
    hidden_states = jax.random.normal(k1, (B, S, H), dtype=jnp.float32)
    input_tensor = jax.random.normal(k2, (B, S, H), dtype=jnp.float32)
    weight = jax.random.normal(k3, (H, H), dtype=jnp.float32) * 0.02
    bias = jax.random.normal(k4, (H,), dtype=jnp.float32) * 0.02
    gamma = jnp.ones((H,), dtype=jnp.float32)
    beta = jnp.zeros((H,), dtype=jnp.float32)

    out = jax.block_until_ready(
        fn(hidden_states, input_tensor, weight, bias, gamma, beta, eps=eps))
    ref = _reference(hidden_states, input_tensor, weight, bias, gamma, beta, eps)
    assert out.shape == (B, S, H)
    assert jnp.max(jnp.abs(out - ref)) < 1e-4, "mismatch vs reference"

    # --- Check 2: ragged token count (M=14, not a multiple of 8) ------------
    S2 = 7
    out2 = jax.block_until_ready(
        fn(hidden_states[:, :S2], input_tensor[:, :S2], weight, bias, gamma,
           beta, eps=eps))
    ref2 = _reference(hidden_states[:, :S2], input_tensor[:, :S2], weight,
                      bias, gamma, beta, eps)
    assert out2.shape == (B, S2, H)
    assert jnp.max(jnp.abs(out2 - ref2)) < 1e-4, "mismatch vs reference (ragged M)"

    # --- Check 3: multi-step grid with a partial last block (M=400, tm=128) -
    B3, S3, H3 = 2, 200, 128
    kk = jax.random.split(jax.random.PRNGKey(1), 4)
    hs3 = jax.random.normal(kk[0], (B3, S3, H3), dtype=jnp.float32)
    it3 = jax.random.normal(kk[1], (B3, S3, H3), dtype=jnp.float32)
    w3 = jax.random.normal(kk[2], (H3, H3), dtype=jnp.float32) * 0.02
    b3 = jax.random.normal(kk[3], (H3,), dtype=jnp.float32) * 0.02
    g3 = jnp.ones((H3,), dtype=jnp.float32) * 1.1
    be3 = jnp.full((H3,), 0.05, dtype=jnp.float32)
    out3 = jax.block_until_ready(
        fn(hs3, it3, w3, b3, g3, be3, eps=eps, tile_m=128))
    ref3 = _reference(hs3, it3, w3, b3, g3, be3, eps)
    assert out3.shape == (B3, S3, H3)
    assert jnp.max(jnp.abs(out3 - ref3)) < 2e-4, "mismatch vs reference (partial block)"

    # --- Check 4: bf16 activations (fast MXU path compiles / runs) ----------
    out4 = jax.block_until_ready(
        fn(hidden_states.astype(jnp.bfloat16), input_tensor.astype(jnp.bfloat16),
           weight, bias, gamma, beta, eps=eps))
    assert out4.dtype == jnp.bfloat16 and out4.shape == (B, S, H)
    assert bool(jnp.all(jnp.isfinite(out4.astype(jnp.float32))))

    print("KERNEL_OK")
</pallas_src>

<mosaic_0001>
module attributes {stable_mosaic.version = 11 : i64} {
  func.func @_self_output_kernel(%arg0: i32, %arg1: memref<16x32xf32, #tpu.memory_space<vmem>>, %arg2: memref<16x32xf32, #tpu.memory_space<vmem>>, %arg3: memref<32x32xf32, #tpu.memory_space<vmem>>, %arg4: memref<1x32xf32, #tpu.memory_space<vmem>>, %arg5: memref<1x32xf32, #tpu.memory_space<vmem>>, %arg6: memref<1x32xf32, #tpu.memory_space<vmem>>, %arg7: memref<16x32xf32, #tpu.memory_space<vmem>>) attributes {dimension_semantics = [#tpu.dimension_semantics<parallel>], iteration_bounds = array<i64: 1>, scalar_prefetch = 0 : i64, scratch_operands = 0 : i64, tpu.core_type = #tpu.core_type<tc>, window_params = [{transform_indices = @transform_0, window_bounds = array<i64: 16, 32>}, {transform_indices = @transform_1, window_bounds = array<i64: 16, 32>}, {pipeline_mode = #tpu.pipeline_mode<synchronous>, transform_indices = @transform_2, window_bounds = array<i64: 32, 32>}, {pipeline_mode = #tpu.pipeline_mode<synchronous>, transform_indices = @transform_3, window_bounds = array<i64: 1, 32>}, {pipeline_mode = #tpu.pipeline_mode<synchronous>, transform_indices = @transform_4, window_bounds = array<i64: 1, 32>}, {pipeline_mode = #tpu.pipeline_mode<synchronous>, transform_indices = @transform_5, window_bounds = array<i64: 1, 32>}, {transform_indices = @transform_6, window_bounds = array<i64: 16, 32>}]} {
    %c0 = arith.constant 0 : index
    %c0_0 = arith.constant 0 : index
    %0 = vector.load %arg1[%c0, %c0_0] : memref<16x32xf32, #tpu.memory_space<vmem>>, vector<16x32xf32>
    %c0_1 = arith.constant 0 : index
    %c0_2 = arith.constant 0 : index
    %1 = vector.load %arg3[%c0_1, %c0_2] : memref<32x32xf32, #tpu.memory_space<vmem>>, vector<32x32xf32>
    %cst = arith.constant dense<0.000000e+00> : vector<16x32xf32>
    %2 = tpu.matmul %0, %1, %cst {dimension_numbers = #tpu.dot_dimension_numbers<[1], [0], [0], [1], [0, 0, 1, 1], [], []>} : vector<16x32xf32>, vector<32x32xf32>, vector<16x32xf32> -> vector<16x32xf32>
    %c0_3 = arith.constant 0 : index
    %c0_4 = arith.constant 0 : index
    %3 = vector.load %arg2[%c0_3, %c0_4] : memref<16x32xf32, #tpu.memory_space<vmem>>, vector<16x32xf32>
    %c0_5 = arith.constant 0 : index
    %c0_6 = arith.constant 0 : index
    %4 = vector.load %arg4[%c0_5, %c0_6] : memref<1x32xf32, #tpu.memory_space<vmem>>, vector<1x32xf32>
    %5 = vector.broadcast %4 : vector<1x32xf32> to vector<16x32xf32>
    %6 = arith.addf %3, %5 : vector<16x32xf32>
    %7 = arith.addf %2, %6 : vector<16x32xf32>
    %cst_7 = arith.constant dense<0.000000e+00> : vector<16xf32>
    %8 = vector.multi_reduction <add>, %7, %cst_7 [1] : vector<16x32xf32> to vector<16xf32>
    %9 = vector.shape_cast %8 : vector<16xf32> to vector<16x1xf32>
    %cst_8 = arith.constant 3.200000e+01 : f32
    %10 = vector.broadcast %cst_8 : f32 to vector<16x1xf32>
    %11 = arith.divf %9, %10 : vector<16x1xf32>
    %12 = vector.broadcast %11 : vector<16x1xf32> to vector<16x32xf32>
    %13 = arith.subf %7, %12 : vector<16x32xf32>
    %14 = arith.mulf %13, %13 : vector<16x32xf32>
    %cst_9 = arith.constant dense<0.000000e+00> : vector<16xf32>
    %15 = vector.multi_reduction <add>, %14, %cst_9 [1] : vector<16x32xf32> to vector<16xf32>
    %16 = vector.shape_cast %15 : vector<16xf32> to vector<16x1xf32>
    %cst_10 = arith.constant 3.200000e+01 : f32
    %17 = vector.broadcast %cst_10 : f32 to vector<16x1xf32>
    %18 = arith.divf %16, %17 : vector<16x1xf32>
    %cst_11 = arith.constant 9.99999996E-13 : f32
    %19 = vector.broadcast %cst_11 : f32 to vector<16x1xf32>
    %20 = arith.addf %18, %19 : vector<16x1xf32>
    %21 = math.rsqrt %20 : vector<16x1xf32>
    %22 = vector.broadcast %21 : vector<16x1xf32> to vector<16x32xf32>
    %23 = arith.mulf %13, %22 : vector<16x32xf32>
    %c0_12 = arith.constant 0 : index
    %c0_13 = arith.constant 0 : index
    %24 = vector.load %arg5[%c0_12, %c0_13] : memref<1x32xf32, #tpu.memory_space<vmem>>, vector<1x32xf32>
    %25 = vector.broadcast %24 : vector<1x32xf32> to vector<16x32xf32>
    %26 = arith.mulf %23, %25 : vector<16x32xf32>
    %c0_14 = arith.constant 0 : index
    %c0_15 = arith.constant 0 : index
    %27 = vector.load %arg6[%c0_14, %c0_15] : memref<1x32xf32, #tpu.memory_space<vmem>>, vector<1x32xf32>
    %28 = vector.broadcast %27 : vector<1x32xf32> to vector<16x32xf32>
    %29 = arith.addf %26, %28 : vector<16x32xf32>
    %c0_16 = arith.constant 0 : index
    %c0_17 = arith.constant 0 : index
    %30 = vector.load %arg7[%c0_16, %c0_17] : memref<16x32xf32, #tpu.memory_space<vmem>>, vector<16x32xf32>
    tpu.vector_store %arg7[%c0_16, %c0_17], %29 {strides = array<i32>} : memref<16x32xf32, #tpu.memory_space<vmem>>, vector<16x32xf32>,
    return
  }
  func.func @transform_0(%arg0: i32) -> (i32, i32) {
    %c0_i32 = arith.constant 0 : i32
    %c0_i32_0 = arith.constant 0 : i32
    return %arg0, %c0_i32 : i32, i32
  }
  func.func @transform_1(%arg0: i32) -> (i32, i32) {
    %c0_i32 = arith.constant 0 : i32
    %c0_i32_0 = arith.constant 0 : i32
    return %arg0, %c0_i32 : i32, i32
  }
  func.func @transform_2(%arg0: i32) -> (i32, i32) {
    %c0_i32 = arith.constant 0 : i32
    %c0_i32_0 = arith.constant 0 : i32
    %c0_i32_1 = arith.constant 0 : i32
    return %c0_i32, %c0_i32_0 : i32, i32
  }
  func.func @transform_3(%arg0: i32) -> (i32, i32) {
    %c0_i32 = arith.constant 0 : i32
    %c0_i32_0 = arith.constant 0 : i32
    %c0_i32_1 = arith.constant 0 : i32
    return %c0_i32, %c0_i32_0 : i32, i32
  }
  func.func @transform_4(%arg0: i32) -> (i32, i32) {
    %c0_i32 = arith.constant 0 : i32
    %c0_i32_0 = arith.constant 0 : i32
    %c0_i32_1 = arith.constant 0 : i32
    return %c0_i32, %c0_i32_0 : i32, i32
  }
  func.func @transform_5(%arg0: i32) -> (i32, i32) {
    %c0_i32 = arith.constant 0 : i32
    %c0_i32_0 = arith.constant 0 : i32
    %c0_i32_1 = arith.constant 0 : i32
    return %c0_i32, %c0_i32_0 : i32, i32
  }
  func.func @transform_6(%arg0: i32) -> (i32, i32) {
    %c0_i32 = arith.constant 0 : i32
    %c0_i32_0 = arith.constant 0 : i32
    return %arg0, %c0_i32 : i32, i32
  }
}

</mosaic_0001>

<llo_original>
// kernel: bert_self_output.1
$region0: #{bert_self_output.1}
  #allocation0 [shape = 'u32[]', space=smem, size = 0x4, offset = 0x4, fixed_abs, tag = 'smem constant byte address 0x4 - core index']
  #allocation1 [shape = 'u32[72,128]{1,0:T(1,128)}', space=vmem, size = 0x9000, scoped, tag = 'internal scratch']
  %s0 = inlined_call_operand.vmem [shape: f32[16,32], index: 0, kind: input, shape index: {}]
  %s1 = inlined_call_operand.vmem [shape: f32[16,32], index: 1, kind: input, shape index: {}]
  %s2 = inlined_call_operand.vmem [shape: f32[32,32], index: 2, kind: input, shape index: {}]
  %s3 = inlined_call_operand.vmem [shape: f32[1,32], index: 3, kind: input, shape index: {}]
  %s4 = inlined_call_operand.vmem [shape: f32[1,32], index: 4, kind: input, shape index: {}]
  %s5 = inlined_call_operand.vmem [shape: f32[1,32], index: 5, kind: input, shape index: {}]
  %s6 = inlined_call_operand.hbm [shape: f32[16,32], index: 6, kind: output, shape index: {}]
  %s7 = sld [smem:[#allocation0]]
  $region34: #{bert_self_output.1} parent=0
    _
  %s9 = ssub.s32 1, %s7
  %s10 = scalar_select 0, %s9, %s7
  $region1: #{bert_self_output.1} parent=0
    #allocation2 [shape = 'u8[8192]{0}', space=vmem, size = 0x2000, scoped, tag = 'output window, operand 0, single buffered']
    #allocation3 [shape = 's32[1]{0}', space=sflag, size = 0x4, scoped, tag = 'scoped memory for bert_self_output.1']
    %11 = vsyncpa [#allocation3], 0
    // Predicated region
    $region2: #{bert_self_output.1} parent=1 // pred_check
      _
    $region3: #{bert_self_output.1} parent=1 // pred_check_branch
      %13 = sbr.rel (0) target = $region5
    $region4: #{bert_self_output.1} parent=1 // pred_region
      _
    $region5: #{bert_self_output.1} parent=1 // pred_fallthru
      _
    // Predicated region
    $region6: #{bert_self_output.1} parent=1 // pred_check
      _
    $region7: #{bert_self_output.1} parent=1 // pred_check_branch
      %15 = sbr.rel (0) target = $region9
    $region8: #{bert_self_output.1} parent=1 // pred_region
      _
    $region9: #{bert_self_output.1} parent=1 // pred_fallthru
      _
    // Predicated region
    $region10: #{bert_self_output.1} parent=1 // pred_check
      _
    $region11: #{bert_self_output.1} parent=1 // pred_check_branch
      %17 = sbr.rel (0) target = $region13
    $region12: #{bert_self_output.1} parent=1 // pred_region
      _
    $region13: #{bert_self_output.1} parent=1 // pred_fallthru
      _
    // Predicated region
    $region14: #{bert_self_output.1} parent=1 // pred_check
      _
    $region15: #{bert_self_output.1} parent=1 // pred_check_branch
      %19 = sbr.rel (0) target = $region17
    $region16: #{bert_self_output.1} parent=1 // pred_region
      _
    $region17: #{bert_self_output.1} parent=1 // pred_fallthru
      _
    // Predicated region
    $region18: #{bert_self_output.1} parent=1 // pred_check
      _
    $region19: #{bert_self_output.1} parent=1 // pred_check_branch
      %21 = sbr.rel (0) target = $region21
    $region20: #{bert_self_output.1} parent=1 // pred_region
      _
    $region21: #{bert_self_output.1} parent=1 // pred_fallthru
      _
    // Predicated region
    $region22: #{bert_self_output.1} parent=1 // pred_check
      _
    $region23: #{bert_self_output.1} parent=1 // pred_check_branch
      %23 = sbr.rel (0) target = $region25
    $region24: #{bert_self_output.1} parent=1 // pred_region
      _
    $region25: #{bert_self_output.1} parent=1 // pred_fallthru
      _
    %v24 = vld [vmem:[%s0] sm:$0xff]
    %v25 = vld [vmem:[%s0 + $0x8] sm:$0xff]
    %v26 = vld [vmem:[%s2] sm:$0xff]
    %v27 = vld [vmem:[%s2 + $0x8] sm:$0xff]
    %v28 = vld [vmem:[%s2 + $0x10] sm:$0xff]
    %v29 = vld [vmem:[%s2 + $0x18] sm:$0xff]
    %v30 = vld [vmem:[%s1] sm:$0xff]
    %v31 = vld [vmem:[%s1 + $0x8] sm:$0xff]
    %v32 = vld [vmem:[%s3] sm:$0x1]
    %v34 = vperm.slane %v32, 0
    %v36 = vadd.f32 %v30, %v34
    %v37 = vadd.f32 %v31, %v34
    %vm38 = vcmask 261120
    %v40 = vsel %vm38, %v24, 0
    %v43 = vsel %vm38, %v25, 0
    %45 = vmatpush.msra.mxu0 0.0
    %46 = vmatpush.msra.mxu0 0.0
    %47 = vmatpush.msra.mxu0 0.0
    %48 = vmatpush.msra.mxu0 0.0
    %49 = vmatpush.msra.mxu0 0.0
    %50 = vmatpush.msra.mxu0 0.0
    %51 = vmatpush.msra.mxu0 0.0
    %52 = vmatpush.msra.mxu0 0.0
    %53 = vmatpush.msra.mxu0 0.0
    %54 = vmatpush.msra.mxu0 0.0
    %55 = vmatpush.msra.mxu0 0.0
    %56 = vmatpush.msra.mxu0 0.0
    %57 = vmatpush.msra.mxu0 %v29
    %58 = vmatpush.msra.mxu0 %v28
    %59 = vmatpush.msra.mxu0 %v27
    %60 = vmatpush.msra.mxu0 %v26
    %61 = vmatmul.f32.gmra.mxu0 %v40
    %v62 = vpop.f32.mrf.mxu0
    %v63 = vadd.f32 %v36, %v62
    %64 = vmatmul.f32.gmra.mxu0 %v43
    %v65 = vpop.f32.mrf.mxu0
    %v66 = vadd.f32 %v37, %v65
    %67 = vdwg.mxu0
    %v68 = vsel %vm38, %v63, 0.0
    %69 = vadd.xlane.f32.xlu0 %v68
    %v70 = vpop.xlane.xlu0 %69
    %v71 = vsel %vm38, %v66, 0.0
    %72 = vadd.xlane.f32.xlu0 %v71
    %v73 = vpop.xlane.xlu0 %72
    %v74 = vrcp.pop 32.0
    %v75 = vmul.f32 32.0, %v74
    %v76 = vsub.f32 1.0, %v75
    %v77 = vmul.f32 %v74, %v76
    %v78 = vadd.f32 %v74, %v77
    %vm79 = vweird.f32 %v74
    %v80 = vsel %vm79, %v74, %v78
    %v81 = vmul.f32 %v70, %v80
    %v82 = vmul.f32 %v73, %v80
    %v83 = vsub.f32 %v63, %v81
    %v84 = vsub.f32 %v66, %v82
    %v85 = vmul.f32 %v83, %v83
    %v86 = vmul.f32 %v84, %v84
    %v87 = vsel %vm38, %v85, 0.0
    %88 = vadd.xlane.f32.xlu0 %v87
    %v89 = vpop.xlane.xlu0 %88
    %v90 = vsel %vm38, %v86, 0.0
    %91 = vadd.xlane.f32.xlu0 %v90
    %v92 = vpop.xlane.xlu0 %91
    %v93 = vmul.f32 %v89, %v80
    %v94 = vmul.f32 %v92, %v80
    %v95 = vadd.f32 %v93, 1e-12
    %v96 = vadd.f32 %v94, 1e-12
    %v97 = vrsqrt.pop %v95
    %v98 = vmul.f32 %v97, %v95
    %v99 = vmul.f32 %v98, %v97
    %v100 = vmul.f32 0.5, %v99
    %v101 = vsub.f32 1.5, %v100
    %v102 = vmul.f32 %v97, %v101
    %vm103 = vweird.f32 %v95
    %vm104 = vweird.f32 %v97
    %vm105 = vmor %vm103, %vm104
    %v106 = vsel %vm105, %v97, %v102
    %v107 = vrsqrt.pop %v96
    %v108 = vmul.f32 %v107, %v96
    %v109 = vmul.f32 %v108, %v107
    %v110 = vmul.f32 0.5, %v109
    %v111 = vsub.f32 1.5, %v110
    %v112 = vmul.f32 %v107, %v111
    %vm113 = vweird.f32 %v96
    %vm114 = vweird.f32 %v107
    %vm115 = vmor %vm113, %vm114
    %v116 = vsel %vm115, %v107, %v112
    %v117 = vmul.f32 %v83, %v106
    %v118 = vmul.f32 %v84, %v116
    %v119 = vld [vmem:[%s4] sm:$0x1]
    %v121 = vperm.slane %v119, 0
    %v123 = vmul.f32 %v117, %v121
    %v124 = vmul.f32 %v118, %v121
    %v125 = vld [vmem:[%s5] sm:$0x1]
    %v127 = vperm.slane %v125, 0
    %v129 = vadd.f32 %v123, %v127
    %v130 = vadd.f32 %v124, %v127
    %131 = vst.msk [vmem:[#allocation2] sm:$0xff] %vm38, %v129
    %132 = vst.msk [vmem:[#allocation2 + $0x8] sm:$0xff] %vm38, %v130
    // Predicated region
    $region26: #{bert_self_output.1} parent=1 // pred_check
      _
    $region27: #{bert_self_output.1} parent=1 // pred_check_branch
      %134 = sbr.rel (0) target = $region29
    $region28: #{bert_self_output.1} parent=1 // pred_region
      %136 = vsyncadd [#allocation3], 0
      %s137 = sshll.u32 [#allocation2], 4
      %s138 = int_to_ptr.vmem [resolvable:$true] %s137
      %s139 = sshll.u32 %s6, 4
      %s140 = int_to_ptr.hbm [resolvable:$true] %s139
      %145 = dma.vmem_to_hbm [thread:$0]  %s138, 256, %s140, [#allocation3], 128, 128, 8
    $region29: #{bert_self_output.1} parent=1 // pred_fallthru
      _
    // Predicated region
    $region30: #{bert_self_output.1} parent=1 // pred_check
      _
    $region31: #{bert_self_output.1} parent=1 // pred_check_branch
      %147 = sbr.rel (0) target = $region33
    $region32: #{bert_self_output.1} parent=1 // pred_region
      %149 = dma.done [#allocation3], 256
    $region33: #{bert_self_output.1} parent=1 // pred_fallthru
      _
    %150 = vsyncpa [#allocation3], 1

</llo_original>
